<compile_context>
chip_gen: v7x
topology: tpu7x:2x2x1
jax: 0.10.0
libtpu: 0.0.40
codegen_flags: <defaults>
</compile_context>

<pallas_src>
import functools

import jax
import jax.numpy as jnp
from jax import lax
from jax.experimental import pallas as pl
from jax.experimental.pallas import tpu as pltpu

LANE = 128        # batch-tile granularity when multi-tile (lane-dense output)
SUBLANE = 8       # class dim padded to this (sublane axis of transposed out)
MAX_TILE_B = 2048  # max batch rows per grid step


def _round_up(x, m):
    return ((x + m - 1) // m) * m


def mlp_kernel(x_ref, w1_ref, b1_ref, w2t_ref, b2_ref, o_ref):
    # fc1: (tb, D) @ (D, H) -- bf16 MXU operands, f32 accumulation.
    h = jnp.dot(
        x_ref[...].astype(jnp.bfloat16),
        w1_ref[...],                      # already bf16 (pre-cast on host)
        preferred_element_type=jnp.float32,
    )
    # Bias + ReLU in f32 on the accumulator (v5e VPU has no bf16).
    h = jnp.maximum(h + b1_ref[...], 0.0)
    # Dropout(p=0.3): identity in eval mode (inference forward pass).
    # TODO(synk): training-mode stochastic dropout (pltpu.prng_random_bits) not emitted.
    #
    # fc2, transposed result: out^T[c, b] = sum_k w2^T[c, k] * h[b, k].
    # NT dot_general (contract minor dim of both operands) -> (C_pad8, tb),
    # so the store below is lane-dense along the batch axis.
    out_t = lax.dot_general(
        w2t_ref[...],                     # (C_pad8, H) bf16, pre-transposed on host
        h.astype(jnp.bfloat16),           # (tb, H) -> cast only at the MXU boundary
        dimension_numbers=(((1,), (1,)), ((), ())),
        preferred_element_type=jnp.float32,
    )
    # Bias as a (C_pad8, 1) column, broadcast along lanes; dense f32 store.
    o_ref[...] = (out_t + b2_ref[...]).astype(o_ref.dtype)


@functools.partial(jax.jit, static_argnames=("tile_b",))
def mlp_classifier_forward(x, w1, b1, w2, b2, *, tile_b=MAX_TILE_B):
    """Fused fc1 -> ReLU -> dropout(eval) -> fc2.

    x: (B, D) f32.  w1: (D, H), b1: (H,), w2: (H, C), b2: (C,).
    Returns logits (B, C) f32.
    """
    B, D = x.shape
    H = w1.shape[1]
    C = w2.shape[1]

    # --- host-side prep (fused by jit; tiny) -------------------------------
    C_pad = _round_up(C, SUBLANE)         # classes on sublanes: pad 6 -> 8
    w1_bf = w1.astype(jnp.bfloat16)
    w2t_bf = (
        jnp.zeros((C_pad, H), jnp.bfloat16).at[:C, :].set(w2.T.astype(jnp.bfloat16))
    )
    b1_2d = b1.reshape(1, H).astype(jnp.float32)
    b2_col = jnp.zeros((C_pad, 1), jnp.float32).at[:C, 0].set(b2.astype(jnp.float32))

    # --- batch tiling: no host-side jnp.pad of x ---------------------------
    if B <= tile_b:
        # Single full block; block shapes equal the array dims, so any B works.
        tb = B
        grid = (1,)
    else:
        # Size tb so the last (ragged) tile isn't mostly padding; Pallas clips
        # the tail block's DMA to the array bounds (no jnp.pad, no blow-up).
        n_tiles = pl.cdiv(B, tile_b)
        tb = _round_up(pl.cdiv(B, n_tiles), LANE)
        grid = (pl.cdiv(B, tb),)

    out_t = pl.pallas_call(
        mlp_kernel,
        out_shape=jax.ShapeDtypeStruct((C_pad, B), jnp.float32),
        grid_spec=pl.GridSpec(
            grid=grid,
            in_specs=[
                pl.BlockSpec((tb, D), lambda i: (i, 0)),       # x: batch-tiled
                pl.BlockSpec((D, H), lambda i: (0, 0)),        # w1: VMEM-resident
                pl.BlockSpec((1, H), lambda i: (0, 0)),        # b1
                pl.BlockSpec((C_pad, H), lambda i: (0, 0)),    # w2^T (padded)
                pl.BlockSpec((C_pad, 1), lambda i: (0, 0)),    # b2 column (padded)
            ],
            out_specs=pl.BlockSpec((C_pad, tb), lambda i: (0, i)),
        ),
        compiler_params=pltpu.CompilerParams(
            # Batch axis is embarrassingly parallel (dual-TC split on v7x
            # once the grid has >= 2 steps; harmless for grid=(1,)).
            dimension_semantics=("parallel",),
        ),
    )(x, w1_bf, b1_2d, w2t_bf, b2_col)

    # Transposed logits back to (B, C); tiny (B*C*4 bytes).
    return out_t[:C, :].T


if __name__ == "__main__":
    # Small shapes consistent with the module: batch=8, input_dim=64,
    # hidden=256 (fixed by the module), num_classes=6 (emotions).
    B, D, H, C = 8, 64, 256, 6

    key = jax.random.PRNGKey(0)
    kx, kw1, kb1, kw2, kb2 = jax.random.split(key, 5)

    # PyTorch-Linear-style init: U(-1/sqrt(fan_in), 1/sqrt(fan_in)).
    bound1 = 1.0 / (D ** 0.5)
    bound2 = 1.0 / (H ** 0.5)
    w1 = jax.random.uniform(kw1, (D, H), jnp.float32, -bound1, bound1)
    b1 = jax.random.uniform(kb1, (H,), jnp.float32, -bound1, bound1)
    w2 = jax.random.uniform(kw2, (H, C), jnp.float32, -bound2, bound2)
    b2 = jax.random.uniform(kb2, (C,), jnp.float32, -bound2, bound2)

    x = jax.random.normal(kx, (B, D), jnp.float32)

    logits = jax.block_until_ready(mlp_classifier_forward(x, w1, b1, w2, b2))
    assert logits.shape == (B, C)

    # Reference with the same bf16-operand / f32-accumulate matmul contract.
    h_ref = jnp.maximum(
        jnp.dot(x.astype(jnp.bfloat16), w1.astype(jnp.bfloat16),
                preferred_element_type=jnp.float32) + b1, 0.0)
    ref = jnp.dot(h_ref.astype(jnp.bfloat16), w2.astype(jnp.bfloat16),
                  preferred_element_type=jnp.float32) + b2
    assert jnp.allclose(logits, ref, atol=5e-3, rtol=5e-3)

    # Sanity check against the pure-f32 reference (bf16 MXU operands loosen tol).
    ref_f32 = jnp.maximum(x @ w1 + b1, 0.0) @ w2 + b2
    assert jnp.allclose(logits, ref_f32, atol=5e-2, rtol=5e-2)

    print("KERNEL_OK")
</pallas_src>

<mosaic_0001>
module attributes {stable_mosaic.version = 11 : i64} {
  func.func @mlp_kernel(%arg0: i32, %arg1: memref<8x64xf32, #tpu.memory_space<vmem>>, %arg2: memref<64x256xbf16, #tpu.memory_space<vmem>>, %arg3: memref<1x256xf32, #tpu.memory_space<vmem>>, %arg4: memref<8x256xbf16, #tpu.memory_space<vmem>>, %arg5: memref<8x1xf32, #tpu.memory_space<vmem>>, %arg6: memref<8x8xf32, #tpu.memory_space<vmem>>) attributes {dimension_semantics = [#tpu.dimension_semantics<parallel>], iteration_bounds = array<i64: 1>, scalar_prefetch = 0 : i64, scratch_operands = 0 : i64, tpu.core_type = #tpu.core_type<tc>, window_params = [{transform_indices = @transform_0, window_bounds = array<i64: 8, 64>}, {pipeline_mode = #tpu.pipeline_mode<synchronous>, transform_indices = @transform_1, window_bounds = array<i64: 64, 256>}, {pipeline_mode = #tpu.pipeline_mode<synchronous>, transform_indices = @transform_2, window_bounds = array<i64: 1, 256>}, {pipeline_mode = #tpu.pipeline_mode<synchronous>, transform_indices = @transform_3, window_bounds = array<i64: 8, 256>}, {pipeline_mode = #tpu.pipeline_mode<synchronous>, transform_indices = @transform_4, window_bounds = array<i64: 8, 1>}, {transform_indices = @transform_5, window_bounds = array<i64: 8, 8>}]} {
    %c0 = arith.constant 0 : index
    %c0_0 = arith.constant 0 : index
    %0 = vector.load %arg1[%c0, %c0_0] : memref<8x64xf32, #tpu.memory_space<vmem>>, vector<8x64xf32>
    %1 = arith.truncf %0 : vector<8x64xf32> to vector<8x64xbf16>
    %c0_1 = arith.constant 0 : index
    %c0_2 = arith.constant 0 : index
    %2 = vector.load %arg2[%c0_1, %c0_2] : memref<64x256xbf16, #tpu.memory_space<vmem>>, vector<64x256xbf16>
    %cst = arith.constant dense<0.000000e+00> : vector<8x256xf32>
    %3 = tpu.matmul %1, %2, %cst {dimension_numbers = #tpu.dot_dimension_numbers<[1], [0], [0], [1], [0, 0, 1, 1], [], []>} : vector<8x64xbf16>, vector<64x256xbf16>, vector<8x256xf32> -> vector<8x256xf32>
    %c0_3 = arith.constant 0 : index
    %c0_4 = arith.constant 0 : index
    %4 = vector.load %arg3[%c0_3, %c0_4] : memref<1x256xf32, #tpu.memory_space<vmem>>, vector<1x256xf32>
    %5 = vector.broadcast %4 : vector<1x256xf32> to vector<8x256xf32>
    %6 = arith.addf %3, %5 : vector<8x256xf32>
    %cst_5 = arith.constant 0.000000e+00 : f32
    %7 = vector.broadcast %cst_5 : f32 to vector<8x256xf32>
    %8 = arith.maximumf %6, %7 : vector<8x256xf32>
    %c0_6 = arith.constant 0 : index
    %c0_7 = arith.constant 0 : index
    %9 = vector.load %arg4[%c0_6, %c0_7] : memref<8x256xbf16, #tpu.memory_space<vmem>>, vector<8x256xbf16>
    %10 = arith.truncf %8 : vector<8x256xf32> to vector<8x256xbf16>
    %cst_8 = arith.constant dense<0.000000e+00> : vector<8x8xf32>
    %11 = tpu.matmul %9, %10, %cst_8 {dimension_numbers = #tpu.dot_dimension_numbers<[1], [1], [0], [0], [0, 0, 1, 0], [], []>} : vector<8x256xbf16>, vector<8x256xbf16>, vector<8x8xf32> -> vector<8x8xf32>
    %c0_9 = arith.constant 0 : index
    %c0_10 = arith.constant 0 : index
    %12 = vector.load %arg5[%c0_9, %c0_10] : memref<8x1xf32, #tpu.memory_space<vmem>>, vector<8x1xf32>
    %13 = vector.broadcast %12 : vector<8x1xf32> to vector<8x8xf32>
    %14 = arith.addf %11, %13 : vector<8x8xf32>
    %c0_11 = arith.constant 0 : index
    %c0_12 = arith.constant 0 : index
    %15 = vector.load %arg6[%c0_11, %c0_12] : memref<8x8xf32, #tpu.memory_space<vmem>>, vector<8x8xf32>
    tpu.vector_store %arg6[%c0_11, %c0_12], %14 {strides = array<i32>} : memref<8x8xf32, #tpu.memory_space<vmem>>, vector<8x8xf32>,
    return
  }
  func.func @transform_0(%arg0: i32) -> (i32, i32) {
    %c0_i32 = arith.constant 0 : i32
    %c0_i32_0 = arith.constant 0 : i32
    return %arg0, %c0_i32 : i32, i32
  }
  func.func @transform_1(%arg0: i32) -> (i32, i32) {
    %c0_i32 = arith.constant 0 : i32
    %c0_i32_0 = arith.constant 0 : i32
    %c0_i32_1 = arith.constant 0 : i32
    return %c0_i32, %c0_i32_0 : i32, i32
  }
  func.func @transform_2(%arg0: i32) -> (i32, i32) {
    %c0_i32 = arith.constant 0 : i32
    %c0_i32_0 = arith.constant 0 : i32
    %c0_i32_1 = arith.constant 0 : i32
    return %c0_i32, %c0_i32_0 : i32, i32
  }
  func.func @transform_3(%arg0: i32) -> (i32, i32) {
    %c0_i32 = arith.constant 0 : i32
    %c0_i32_0 = arith.constant 0 : i32
    %c0_i32_1 = arith.constant 0 : i32
    return %c0_i32, %c0_i32_0 : i32, i32
  }
  func.func @transform_4(%arg0: i32) -> (i32, i32) {
    %c0_i32 = arith.constant 0 : i32
    %c0_i32_0 = arith.constant 0 : i32
    %c0_i32_1 = arith.constant 0 : i32
    return %c0_i32, %c0_i32_0 : i32, i32
  }
  func.func @transform_5(%arg0: i32) -> (i32, i32) {
    %c0_i32 = arith.constant 0 : i32
    %c0_i32_0 = arith.constant 0 : i32
    return %c0_i32, %arg0 : i32, i32
  }
}

</mosaic_0001>

<llo_original>
// kernel: mlp_classifier_forward.1
$region0: #{mlp_classifier_forward.1}
  #allocation0 [shape = 'u32[]', space=smem, size = 0x4, offset = 0x4, fixed_abs, tag = 'smem constant byte address 0x4 - core index']
  #allocation1 [shape = 'u32[144,128]{1,0:T(1,128)}', space=vmem, size = 0x12000, scoped, tag = 'internal scratch']
  %s0 = inlined_call_operand.vmem [shape: f32[8,64], index: 0, kind: input, shape index: {}]
  %s1 = inlined_call_operand.vmem [shape: bf16[64,256], index: 1, kind: input, shape index: {}]
  %s2 = inlined_call_operand.vmem [shape: f32[1,256], index: 2, kind: input, shape index: {}]
  %s3 = inlined_call_operand.vmem [shape: bf16[8,256], index: 3, kind: input, shape index: {}]
  %s4 = inlined_call_operand.vmem [shape: f32[8,1], index: 4, kind: input, shape index: {}]
  %s5 = inlined_call_operand.vmem [shape: f32[8,8], index: 5, kind: output, shape index: {}]
  %s6 = sld [smem:[#allocation0]]
  $region30: #{mlp_classifier_forward.1} parent=0
    _
  %s8 = ssub.s32 1, %s6
  %s9 = scalar_select 0, %s8, %s6
  // Predicated region
  $region2: #{mlp_classifier_forward.1} parent=0 // pred_check
    _
  $region3: #{mlp_classifier_forward.1} parent=0 // pred_check_branch
    %11 = sbr.rel (0) target = $region5
  $region4: #{mlp_classifier_forward.1} parent=0 // pred_region
    _
  $region5: #{mlp_classifier_forward.1} parent=0 // pred_fallthru
    _
  // Predicated region
  $region6: #{mlp_classifier_forward.1} parent=0 // pred_check
    _
  $region7: #{mlp_classifier_forward.1} parent=0 // pred_check_branch
    %13 = sbr.rel (0) target = $region9
  $region8: #{mlp_classifier_forward.1} parent=0 // pred_region
    _
  $region9: #{mlp_classifier_forward.1} parent=0 // pred_fallthru
    _
  // Predicated region
  $region10: #{mlp_classifier_forward.1} parent=0 // pred_check
    _
  $region11: #{mlp_classifier_forward.1} parent=0 // pred_check_branch
    %15 = sbr.rel (0) target = $region13
  $region12: #{mlp_classifier_forward.1} parent=0 // pred_region
    _
  $region13: #{mlp_classifier_forward.1} parent=0 // pred_fallthru
    _
  // Predicated region
  $region14: #{mlp_classifier_forward.1} parent=0 // pred_check
    _
  $region15: #{mlp_classifier_forward.1} parent=0 // pred_check_branch
    %17 = sbr.rel (0) target = $region17
  $region16: #{mlp_classifier_forward.1} parent=0 // pred_region
    _
  $region17: #{mlp_classifier_forward.1} parent=0 // pred_fallthru
    _
  // Predicated region
  $region18: #{mlp_classifier_forward.1} parent=0 // pred_check
    _
  $region19: #{mlp_classifier_forward.1} parent=0 // pred_check_branch
    %19 = sbr.rel (0) target = $region21
  $region20: #{mlp_classifier_forward.1} parent=0 // pred_region
    _
  $region21: #{mlp_classifier_forward.1} parent=0 // pred_fallthru
    _
  %v21 = vld [vmem:[%s0] sm:$0xff]
  %v22 = vpack.c.bf16 %v21, %v21
  %v23 = vld [vmem:[%s1] sm:$0xff]
  %v24 = vld [vmem:[%s1 + $0x8] sm:$0xff]
  %v25 = vld [vmem:[%s1 + $0x10] sm:$0xff]
  %v26 = vld [vmem:[%s1 + $0x18] sm:$0xff]
  %v27 = vld [vmem:[%s1 + $0x20] sm:$0xff]
  %v28 = vld [vmem:[%s1 + $0x28] sm:$0xff]
  %v29 = vld [vmem:[%s1 + $0x30] sm:$0xff]
  %v30 = vld [vmem:[%s1 + $0x38] sm:$0xff]
  %v31 = vld [vmem:[%s2] sm:$0x3]
  %v33 = vlaneseq
  %v34 = vshrl.u32 %v33, 7
  %v35 = vsub.s32 0, %v34
  %v36 = vrot.slane %v31, %v35
  %v37 = vlaneseq
  %v38 = vshrl.u32 %v37, 7
  %v39 = vsub.s32 1, %v38
  %v40 = vrot.slane %v31, %v39
  %v51 = vunpack.c.l.b16 %v23
  %v52 = vunpack.c.h.b16 %v23
  %v53 = vunpack.c.l.b16 %v24
  %v54 = vunpack.c.h.b16 %v24
  %v55 = vunpack.c.l.b16 %v25
  %v56 = vunpack.c.h.b16 %v25
  %v57 = vunpack.c.l.b16 %v26
  %v58 = vunpack.c.h.b16 %v26
  %v59 = vunpack.c.l.b16 %v27
  %v60 = vunpack.c.h.b16 %v27
  %v61 = vunpack.c.l.b16 %v28
  %v62 = vunpack.c.h.b16 %v28
  %v63 = vunpack.c.l.b16 %v29
  %v64 = vunpack.c.h.b16 %v29
  %v65 = vunpack.c.l.b16 %v30
  %v66 = vunpack.c.h.b16 %v30
  %v67 = vpack.c.b16 %v53, %v51
  %v68 = vpack.c.b16 %v54, %v52
  %v69 = vpack.c.b16 %v57, %v55
  %v70 = vpack.c.b16 %v58, %v56
  %v71 = vpack.c.b16 %v61, %v59
  %v72 = vpack.c.b16 %v62, %v60
  %v73 = vpack.c.b16 %v65, %v63
  %v74 = vpack.c.b16 %v66, %v64
  %vm83 = vcmask 523264
  %v85 = vsel %vm83, %v22, 0
  %87 = vmatprep.subr.bf16.mxu0 %v68
  %88 = vmatpush1.bf16.msra.mxu0 %v67
  %89 = vmatprep.subr.bf16.mxu0 %v70
  %90 = vmatpush1.bf16.msra.mxu0 %v69
  %91 = vmatprep.subr.bf16.mxu0 %v72
  %92 = vmatpush1.bf16.msra.mxu0 %v71
  %93 = vmatprep.subr.bf16.mxu0 %v74
  %94 = vmatpush1.bf16.msra.mxu0 %v73
  %95 = vmatprep.subr.bf16.mxu0 0
  %96 = vmatpush1.bf16.msra.mxu0 0
  %97 = vmatprep.subr.bf16.mxu0 0
  %98 = vmatpush1.bf16.msra.mxu0 0
  %99 = vmatprep.subr.bf16.mxu0 0
  %100 = vmatpush1.bf16.msra.mxu0 0
  %101 = vmatprep.subr.bf16.mxu0 0
  %102 = vmatpush1.bf16.msra.mxu0 0
  %103 = vmatprep.subr.bf16.mxu0 0
  %104 = vmatpush1.bf16.msra.mxu0 0
  %105 = vmatprep.subr.bf16.mxu0 0
  %106 = vmatpush1.bf16.msra.mxu0 0
  %107 = vmatprep.subr.bf16.mxu0 0
  %108 = vmatpush1.bf16.msra.mxu0 0
  %109 = vmatprep.subr.bf16.mxu0 0
  %110 = vmatpush1.bf16.msra.mxu0 0
  %111 = vmatprep.subr.bf16.mxu0 0
  %112 = vmatpush1.bf16.msra.mxu0 0
  %113 = vmatprep.subr.bf16.mxu0 0
  %114 = vmatpush1.bf16.msra.mxu0 0
  %115 = vmatprep.subr.bf16.mxu0 0
  %116 = vmatpush1.bf16.msra.mxu0 0
  %117 = vmatprep.subr.bf16.mxu0 0
  %118 = vmatpush1.bf16.msra.mxu0 0
  %119 = vmatprep.mubr.bf16.mxu0 0
  %120 = vmatmul.mubr.bf16.gmra.mrb[0].mxu0 %v85
  %v121 = vpop.f32.mrb[0].mxu0
  %v122 = vadd.f32 %v36, %v121
  %v123 = vpop.f32.mrb[0].mxu0
  %v124 = vadd.f32 %v40, %v123
  %v125 = vpop.f32.mrb[0].mxu0
  %v126 = vpop.f32.mrb[0].mxu0
  %127 = vdwg.mxu0
  %v128 = vmax.f32 %v122, 0.0
  %v129 = vmax.f32 %v124, 0.0
  %v130 = vld [vmem:[%s3] sm:$0xff]
  %v131 = vpack.c.bf16 %v128, %v128
  %v132 = vpack.c.bf16 %v129, %v129
  %v133 = vld [vmem:[%s4] sm:$0xff]
  %135 = vset.pattern.permute.xlu0 0
  %136 = vperm.xlu0 %135, %v133
  %v137 = vpop.permute.xlu0 %136
  %v140 = vunpack.c.l.b16 %v130
  %v141 = vunpack.c.h.b16 %v130
  %v142 = vpack.c.b16 %v140, %v140
  %v143 = vpack.c.b16 %v141, %v141
  %146 = vmatprep.subr.bf16.mxu0 %v132
  %147 = vmatpush1.bf16.xpose.msra.mxu0 %v131
  %148 = vmatprep.subr.bf16.mxu0 0
  %149 = vmatpush1.bf16.xpose.msra.mxu0 0
  %150 = vmatprep.subr.bf16.mxu0 0
  %151 = vmatpush1.bf16.xpose.msra.mxu0 0
  %152 = vmatprep.subr.bf16.mxu0 0
  %153 = vmatpush1.bf16.xpose.msra.mxu0 0
  %154 = vmatprep.subr.bf16.mxu0 0
  %155 = vmatpush1.bf16.xpose.msra.mxu0 0
  %156 = vmatprep.subr.bf16.mxu0 0
  %157 = vmatpush1.bf16.xpose.msra.mxu0 0
  %158 = vmatprep.subr.bf16.mxu0 0
  %159 = vmatpush1.bf16.xpose.msra.mxu0 0
  %160 = vmatprep.subr.bf16.mxu0 0
  %161 = vmatpush1.bf16.xpose.msra.mxu0 0
  %162 = vmatprep.subr.bf16.mxu0 0
  %163 = vmatpush1.bf16.xpose.msra.mxu0 0
  %164 = vmatprep.subr.bf16.mxu0 0
  %165 = vmatpush1.bf16.xpose.msra.mxu0 0
  %166 = vmatprep.subr.bf16.mxu0 0
  %167 = vmatpush1.bf16.xpose.msra.mxu0 0
  %168 = vmatprep.subr.bf16.mxu0 0
  %169 = vmatpush1.bf16.xpose.msra.mxu0 0
  %170 = vmatprep.subr.bf16.mxu0 0
  %171 = vmatpush1.bf16.xpose.msra.mxu0 0
  %172 = vmatprep.subr.bf16.mxu0 0
  %173 = vmatpush1.bf16.xpose.msra.mxu0 0
  %174 = vmatprep.subr.bf16.mxu0 0
  %175 = vmatpush1.bf16.xpose.msra.mxu0 0
  %176 = vmatprep.subr.bf16.mxu0 0
  %177 = vmatpush1.bf16.xpose.msra.mxu0 0
  %178 = vmatprep.mubr.bf16.mxu0 %v143
  %179 = vmatmul.mubr.bf16.gmra.mrb[0].mxu0 %v142
  %v180 = vpop.f32.mrb[0].mxu0
  %v181 = vadd.f32 %v137, %v180
  %v182 = vpop.f32.mrb[0].mxu0
  %v183 = vpop.f32.mrb[0].mxu0
  %v184 = vpop.f32.mrb[0].mxu0
  %185 = vdwg.mxu0
  %vm186 = vcmask 64512
  %187 = vst.msk [vmem:[%s5] sm:$0xff] %vm186, %v181
  // Predicated region
  $region22: #{mlp_classifier_forward.1} parent=0 // pred_check
    _
  $region23: #{mlp_classifier_forward.1} parent=0 // pred_check_branch
    %189 = sbr.rel (0) target = $region25
  $region24: #{mlp_classifier_forward.1} parent=0 // pred_region
    _
  $region25: #{mlp_classifier_forward.1} parent=0 // pred_fallthru
    _
  // Predicated region
  $region26: #{mlp_classifier_forward.1} parent=0 // pred_check
    _
  $region27: #{mlp_classifier_forward.1} parent=0 // pred_check_branch
    %191 = sbr.rel (0) target = $region29
  $region28: #{mlp_classifier_forward.1} parent=0 // pred_region
    _
  $region29: #{mlp_classifier_forward.1} parent=0 // pred_fallthru
    _

</llo_original>
